<compile_context>
chip_gen: v5e
topology: v5e:2x2
jax: 0.10.0
libtpu: 0.0.40
codegen_flags: <defaults>
</compile_context>

<pallas_src>
import functools

import jax
import jax.numpy as jnp
import numpy as np
from jax import lax
from jax.experimental import pallas as pl
from jax.experimental.pallas import tpu as pltpu


def _wavenet_block_kernel(x_ref, wfg_ref, bfg_ref, wrs_ref, brs_ref,
                          out_ref, halo_ref, *, K, dilation, R, C_in, S, TL):
    """One (batch, L-tile) block.

    x_ref    : (1, TL, C_in)        current tile (f32, identity path kept f32)
    wfg_ref  : (K*C_in, 2R)  bf16   fused filter|gate weights, tap-major rows
    bfg_ref  : (1, 2R)       f32
    wrs_ref  : (R, C_in+S)   bf16   fused residual|skip 1x1 weights
    brs_ref  : (1, C_in+S)   f32
    out_ref  : (1, TL, C_in+S)      [residual-out | skip] lane-dense slab
    halo_ref : (max(pad,1), C_in) bf16 VMEM scratch carrying the previous tile's tail
    """
    pad = (K - 1) * dilation
    t = pl.program_id(1)

    x_cur = x_ref[0]                                   # (TL, C_in) f32
    x_bf = x_cur.astype(jnp.bfloat16)                  # MXU operand

    if pad > 0:
        # Causal left padding: first tile of each batch row sees zeros.
        @pl.when(t == 0)
        def _():
            halo_ref[...] = jnp.zeros_like(halo_ref)

        halo = halo_ref[...]                           # (pad, C_in) bf16 (prev tile's tail)
        xwin = jnp.concatenate([halo, x_bf], axis=0)   # (TL + pad, C_in)
        # Carry this tile's tail forward for the next L-tile of the same batch row.
        halo_ref[...] = x_bf[TL - pad:TL, :]
    else:
        xwin = x_bf

    # Collapse the K dilated taps into one wide matmul:
    #   taps: (TL, K*C_in)  @  wfg: (K*C_in, 2R)  ->  (TL, 2R), f32 accumulation.
    taps = jnp.concatenate(
        [xwin[j * dilation:j * dilation + TL, :] for j in range(K)], axis=-1)
    fg = jnp.dot(taps, wfg_ref[...], preferred_element_type=jnp.float32) + bfg_ref[...]

    gated = jnp.tanh(fg[:, :R]) * jax.nn.sigmoid(fg[:, R:])          # (TL, R) f32, EUP

    # Fused residual|skip 1x1 projection: one matmul, one lane-dense store.
    rs = jnp.dot(gated.astype(jnp.bfloat16), wrs_ref[...],
                 preferred_element_type=jnp.float32) + brs_ref[...]  # (TL, C_in+S)

    x_ext = jnp.concatenate([x_cur, jnp.zeros((TL, S), x_cur.dtype)], axis=-1)
    out_ref[0] = (rs + x_ext).astype(out_ref.dtype)


def _pick_tile_l(L, pad):
    """Generation-aware L-tile length: bigger tiles on 128 MiB-VMEM parts (v5e/v6e)."""
    vmem_bytes = 64 * 1024 * 1024
    try:
        info = pltpu.get_tpu_info()
        vmem_bytes = int(getattr(info, "vmem_capacity_bytes", vmem_bytes))
    except Exception:
        pass
    target = 2048 if vmem_bytes >= 100 * 1024 * 1024 else 1024
    if L <= target:
        return L
    cand = (target // 8) * 8
    while cand >= 8:
        if L % cand == 0 and cand >= pad:
            return cand
        cand -= 8
    return L


def pack_params(w_filt, b_filt, w_gate, b_gate, w_res, b_res, w_skip, b_skip):
    """Repack PyTorch Conv1d weights (O, I, K) into fused, MXU-friendly bf16 matrices."""
    R, C_in, K = w_filt.shape
    wf = jnp.transpose(w_filt, (2, 1, 0))              # (K, C_in, R)
    wg = jnp.transpose(w_gate, (2, 1, 0))              # (K, C_in, R)
    w_fg = jnp.concatenate([wf, wg], axis=-1).reshape(K * C_in, 2 * R).astype(jnp.bfloat16)
    b_fg = jnp.concatenate([b_filt, b_gate])[None, :].astype(jnp.float32)
    w_rs = jnp.concatenate([jnp.transpose(w_res[:, :, 0]),      # (R, C_in)
                            jnp.transpose(w_skip[:, :, 0])],    # (R, S)
                           axis=-1).astype(jnp.bfloat16)        # (R, C_in+S)
    b_rs = jnp.concatenate([b_res, b_skip])[None, :].astype(jnp.float32)
    return w_fg, b_fg, w_rs, b_rs


def wavenet_residual_block(x, w_fg, b_fg, w_rs, b_rs, *, dilation, kernel_size,
                           residual_channels, skip_channels, tile_l=None):
    """x: (B, L, C_in) channels-last f32.  Returns (out (B,L,C_in), skip (B,L,S))."""
    B, L, C_in = x.shape
    K = kernel_size
    R = residual_channels
    S = skip_channels
    pad = (K - 1) * dilation

    TL = tile_l if tile_l is not None else _pick_tile_l(L, pad)
    assert L % TL == 0, "L tile must divide L"
    assert TL == L or TL % 8 == 0, "L tile must be a multiple of 8 (or equal L)"
    assert pad <= TL, "halo (K-1)*dilation must fit in one L tile"
    nT = L // TL

    kernel = functools.partial(_wavenet_block_kernel, K=K, dilation=dilation,
                               R=R, C_in=C_in, S=S, TL=TL)

    combined = pl.pallas_call(
        kernel,
        out_shape=jax.ShapeDtypeStruct((B, L, C_in + S), x.dtype),
        grid=(B, nT),
        in_specs=[
            pl.BlockSpec((1, TL, C_in), lambda b, t: (b, t, 0)),        # current x tile
            pl.BlockSpec((K * C_in, 2 * R), lambda b, t: (0, 0)),       # fused filt|gate W
            pl.BlockSpec((1, 2 * R), lambda b, t: (0, 0)),              # fused filt|gate b
            pl.BlockSpec((R, C_in + S), lambda b, t: (0, 0)),           # fused res|skip W
            pl.BlockSpec((1, C_in + S), lambda b, t: (0, 0)),           # fused res|skip b
        ],
        out_specs=pl.BlockSpec((1, TL, C_in + S), lambda b, t: (b, t, 0)),
        scratch_shapes=[pltpu.VMEM((max(pad, 1), C_in), jnp.bfloat16)],  # halo carry
        compiler_params=pltpu.CompilerParams(
            # L axis carries the causal halo between consecutive tiles -> "arbitrary";
            # batch axis is independent -> "parallel" (megacore / v7x dual-TC).
            dimension_semantics=("parallel", "arbitrary"),
            vmem_limit_bytes=32 * 1024 * 1024),
    )(x, w_fg, b_fg, w_rs, b_rs)

    return combined[..., :C_in], combined[..., C_in:]


def torch_semantics_reference(x_ncl, w_filt, b_filt, w_gate, b_gate,
                              w_res, b_res, w_skip, b_skip, *, dilation, kernel_size):
    """Pure-JAX f32 reference reproducing the PyTorch module exactly (NCL layout)."""
    B, C_in, L = x_ncl.shape
    pad = (kernel_size - 1) * dilation
    dn = ("NCH", "OIH", "NCH")

    def conv1d(inp, w, b, dil, p):
        y = lax.conv_general_dilated(inp, w, window_strides=(1,),
                                     padding=[(p, p)], rhs_dilation=(dil,),
                                     dimension_numbers=dn)
        return y + b[None, :, None]

    filt = conv1d(x_ncl, w_filt, b_filt, dilation, pad)[:, :, :L]
    gate = conv1d(x_ncl, w_gate, b_gate, dilation, pad)[:, :, :L]
    gated = jnp.tanh(filt) * jax.nn.sigmoid(gate)
    skip = conv1d(gated, w_skip, b_skip, 1, 0)
    residual = conv1d(gated, w_res, b_res, 1, 0)
    out = x_ncl + residual
    return out, skip


if __name__ == "__main__":
    # Small shapes consistent with the module.
    B, C_in, L = 2, 16, 64
    R, S = 32, 32                  # residual_channels, skip_channels
    K, dilation = 2, 2

    key = jax.random.PRNGKey(0)
    ks = jax.random.split(key, 9)

    # Deterministic synthetic parameters in PyTorch Conv1d layout (O, I, K).
    w_filt = 0.1 * jax.random.normal(ks[0], (R, C_in, K), jnp.float32)
    b_filt = 0.1 * jax.random.normal(ks[1], (R,), jnp.float32)
    w_gate = 0.1 * jax.random.normal(ks[2], (R, C_in, K), jnp.float32)
    b_gate = 0.1 * jax.random.normal(ks[3], (R,), jnp.float32)
    w_res = 0.1 * jax.random.normal(ks[4], (C_in, R, 1), jnp.float32)
    b_res = 0.1 * jax.random.normal(ks[5], (C_in,), jnp.float32)
    w_skip = 0.1 * jax.random.normal(ks[6], (S, R, 1), jnp.float32)
    b_skip = 0.1 * jax.random.normal(ks[7], (S,), jnp.float32)

    x_ncl = jax.random.normal(ks[8], (B, C_in, L), jnp.float32)   # PyTorch layout

    # Repack for the channels-last Pallas kernel.
    x_blc = jnp.transpose(x_ncl, (0, 2, 1))                        # (B, L, C_in)
    w_fg, b_fg, w_rs, b_rs = pack_params(w_filt, b_filt, w_gate, b_gate,
                                         w_res, b_res, w_skip, b_skip)

    # tile_l=32 -> 2 L-tiles per batch row, exercising the causal halo carry path.
    out_blc, skip_bls = wavenet_residual_block(
        x_blc, w_fg, b_fg, w_rs, b_rs, dilation=dilation, kernel_size=K,
        residual_channels=R, skip_channels=S, tile_l=32)
    out_blc = jax.block_until_ready(out_blc)
    skip_bls = jax.block_until_ready(skip_bls)

    # Back to PyTorch layout (B, C, L) for comparison.
    out_ncl = jnp.transpose(out_blc, (0, 2, 1))
    skip_ncl = jnp.transpose(skip_bls, (0, 2, 1))

    ref_out, ref_skip = torch_semantics_reference(
        x_ncl, w_filt, b_filt, w_gate, b_gate, w_res, b_res, w_skip, b_skip,
        dilation=dilation, kernel_size=K)

    # bf16 MXU operands -> looser tolerance than the pure-f32 reference.
    np.testing.assert_allclose(np.asarray(out_ncl), np.asarray(ref_out), rtol=3e-2, atol=3e-2)
    np.testing.assert_allclose(np.asarray(skip_ncl), np.asarray(ref_skip), rtol=3e-2, atol=3e-2)

    print("KERNEL_OK")
</pallas_src>

<mosaic_0001>
module attributes {stable_mosaic.version = 11 : i64} {
  func.func @_wavenet_block_kernel(%arg0: i32, %arg1: i32, %arg2: memref<1x32x16xf32, #tpu.memory_space<vmem>>, %arg3: memref<32x64xbf16, #tpu.memory_space<vmem>>, %arg4: memref<1x64xf32, #tpu.memory_space<vmem>>, %arg5: memref<32x48xbf16, #tpu.memory_space<vmem>>, %arg6: memref<1x48xf32, #tpu.memory_space<vmem>>, %arg7: memref<1x32x48xf32, #tpu.memory_space<vmem>>, %arg8: memref<2x16xbf16, #tpu.memory_space<vmem>>) attributes {dimension_semantics = [#tpu.dimension_semantics<parallel>, #tpu.dimension_semantics<arbitrary>], iteration_bounds = array<i64: 2, 2>, scalar_prefetch = 0 : i64, scratch_operands = 1 : i64, tpu.core_type = #tpu.core_type<tc>, window_params = [{transform_indices = @transform_0, window_bounds = array<i64: 1, 32, 16>}, {pipeline_mode = #tpu.pipeline_mode<synchronous>, transform_indices = @transform_1, window_bounds = array<i64: 32, 64>}, {pipeline_mode = #tpu.pipeline_mode<synchronous>, transform_indices = @transform_2, window_bounds = array<i64: 1, 64>}, {pipeline_mode = #tpu.pipeline_mode<synchronous>, transform_indices = @transform_3, window_bounds = array<i64: 32, 48>}, {pipeline_mode = #tpu.pipeline_mode<synchronous>, transform_indices = @transform_4, window_bounds = array<i64: 1, 48>}, {transform_indices = @transform_5, window_bounds = array<i64: 1, 32, 48>}]} {
    %c0 = arith.constant 0 : index
    %c0_0 = arith.constant 0 : index
    %c0_1 = arith.constant 0 : index
    %0 = vector.load %arg2[%c0, %c0_0, %c0_1] : memref<1x32x16xf32, #tpu.memory_space<vmem>>, vector<1x32x16xf32>
    %1 = vector.shape_cast %0 : vector<1x32x16xf32> to vector<32x16xf32>
    %2 = arith.truncf %1 : vector<32x16xf32> to vector<32x16xbf16>
    %c0_i32 = arith.constant 0 : i32
    %3 = arith.cmpi eq, %arg1, %c0_i32 : i32
    %4 = arith.extui %3 : i1 to i32
    %c0_i32_2 = arith.constant 0 : i32
    %5 = arith.cmpi ne, %4, %c0_i32_2 : i32
    scf.if %5 {
      %cst_21 = arith.constant 0.000000e+00 : bf16
      %39 = vector.broadcast %cst_21 : bf16 to vector<2x16xbf16>
      %c0_22 = arith.constant 0 : index
      %c0_23 = arith.constant 0 : index
      %40 = vector.load %arg8[%c0_22, %c0_23] : memref<2x16xbf16, #tpu.memory_space<vmem>>, vector<2x16xbf16>
      tpu.vector_store %arg8[%c0_22, %c0_23], %39 {strides = array<i32>} : memref<2x16xbf16, #tpu.memory_space<vmem>>, vector<2x16xbf16>,
    } else {
    }
    %c0_3 = arith.constant 0 : index
    %c0_4 = arith.constant 0 : index
    %6 = vector.load %arg8[%c0_3, %c0_4] : memref<2x16xbf16, #tpu.memory_space<vmem>>, vector<2x16xbf16>
    %7 = tpu.concatenate %6, %2 in 0 : vector<2x16xbf16>, vector<32x16xbf16> -> vector<34x16xbf16>
    %8 = vector.extract_strided_slice %2 {offsets = [30, 0], sizes = [2, 16], strides = [1, 1]} : vector<32x16xbf16> to vector<2x16xbf16>
    %c0_5 = arith.constant 0 : index
    %c0_6 = arith.constant 0 : index
    %9 = vector.load %arg8[%c0_5, %c0_6] : memref<2x16xbf16, #tpu.memory_space<vmem>>, vector<2x16xbf16>
    tpu.vector_store %arg8[%c0_5, %c0_6], %8 {strides = array<i32>} : memref<2x16xbf16, #tpu.memory_space<vmem>>, vector<2x16xbf16>,
    %10 = vector.extract_strided_slice %7 {offsets = [0, 0], sizes = [32, 16], strides = [1, 1]} : vector<34x16xbf16> to vector<32x16xbf16>
    %11 = vector.extract_strided_slice %7 {offsets = [2, 0], sizes = [32, 16], strides = [1, 1]} : vector<34x16xbf16> to vector<32x16xbf16>
    %12 = tpu.concatenate %10, %11 in 1 : vector<32x16xbf16>, vector<32x16xbf16> -> vector<32x32xbf16>
    %c0_7 = arith.constant 0 : index
    %c0_8 = arith.constant 0 : index
    %13 = vector.load %arg3[%c0_7, %c0_8] : memref<32x64xbf16, #tpu.memory_space<vmem>>, vector<32x64xbf16>
    %cst = arith.constant dense<0.000000e+00> : vector<32x64xf32>
    %14 = tpu.matmul %12, %13, %cst {dimension_numbers = #tpu.dot_dimension_numbers<[1], [0], [0], [1], [0, 0, 1, 1], [], []>} : vector<32x32xbf16>, vector<32x64xbf16>, vector<32x64xf32> -> vector<32x64xf32>
    %c0_9 = arith.constant 0 : index
    %c0_10 = arith.constant 0 : index
    %15 = vector.load %arg4[%c0_9, %c0_10] : memref<1x64xf32, #tpu.memory_space<vmem>>, vector<1x64xf32>
    %16 = vector.broadcast %15 : vector<1x64xf32> to vector<32x64xf32>
    %17 = arith.addf %14, %16 : vector<32x64xf32>
    %18 = vector.extract_strided_slice %17 {offsets = [0, 0], sizes = [32, 32], strides = [1, 1]} : vector<32x64xf32> to vector<32x32xf32>
    %19 = math.tanh %18 : vector<32x32xf32>
    %20 = vector.extract_strided_slice %17 {offsets = [0, 32], sizes = [32, 32], strides = [1, 1]} : vector<32x64xf32> to vector<32x32xf32>
    %21 = arith.negf %20 : vector<32x32xf32>
    %22 = math.exp %21 : vector<32x32xf32>
    %cst_11 = arith.constant 1.000000e+00 : f32
    %23 = vector.broadcast %cst_11 : f32 to vector<32x32xf32>
    %24 = arith.addf %23, %22 : vector<32x32xf32>
    %25 = arith.divf %23, %24 : vector<32x32xf32>
    %26 = arith.mulf %19, %25 : vector<32x32xf32>
    %27 = arith.truncf %26 : vector<32x32xf32> to vector<32x32xbf16>
    %c0_12 = arith.constant 0 : index
    %c0_13 = arith.constant 0 : index
    %28 = vector.load %arg5[%c0_12, %c0_13] : memref<32x48xbf16, #tpu.memory_space<vmem>>, vector<32x48xbf16>
    %cst_14 = arith.constant dense<0.000000e+00> : vector<32x48xf32>
    %29 = tpu.matmul %27, %28, %cst_14 {dimension_numbers = #tpu.dot_dimension_numbers<[1], [0], [0], [1], [0, 0, 1, 1], [], []>} : vector<32x32xbf16>, vector<32x48xbf16>, vector<32x48xf32> -> vector<32x48xf32>
    %c0_15 = arith.constant 0 : index
    %c0_16 = arith.constant 0 : index
    %30 = vector.load %arg6[%c0_15, %c0_16] : memref<1x48xf32, #tpu.memory_space<vmem>>, vector<1x48xf32>
    %31 = vector.broadcast %30 : vector<1x48xf32> to vector<32x48xf32>
    %32 = arith.addf %29, %31 : vector<32x48xf32>
    %cst_17 = arith.constant 0.000000e+00 : f32
    %33 = vector.broadcast %cst_17 : f32 to vector<32x32xf32>
    %34 = tpu.concatenate %1, %33 in 1 : vector<32x16xf32>, vector<32x32xf32> -> vector<32x48xf32>
    %35 = arith.addf %32, %34 : vector<32x48xf32>
    %c0_18 = arith.constant 0 : index
    %c0_19 = arith.constant 0 : index
    %c0_20 = arith.constant 0 : index
    %36 = vector.load %arg7[%c0_18, %c0_19, %c0_20] : memref<1x32x48xf32, #tpu.memory_space<vmem>>, vector<1x32x48xf32>
    %37 = vector.shape_cast %36 : vector<1x32x48xf32> to vector<32x48xf32>
    %38 = vector.shape_cast %35 : vector<32x48xf32> to vector<1x32x48xf32>
    tpu.vector_store %arg7[%c0_18, %c0_19, %c0_20], %38 {strides = array<i32>} : memref<1x32x48xf32, #tpu.memory_space<vmem>>, vector<1x32x48xf32>,
    return
  }
  func.func @transform_0(%arg0: i32, %arg1: i32) -> (i32, i32, i32) {
    %c0_i32 = arith.constant 0 : i32
    %c0_i32_0 = arith.constant 0 : i32
    return %arg0, %arg1, %c0_i32 : i32, i32, i32
  }
  func.func @transform_1(%arg0: i32, %arg1: i32) -> (i32, i32) {
    %c0_i32 = arith.constant 0 : i32
    %c0_i32_0 = arith.constant 0 : i32
    %c0_i32_1 = arith.constant 0 : i32
    return %c0_i32, %c0_i32_0 : i32, i32
  }
  func.func @transform_2(%arg0: i32, %arg1: i32) -> (i32, i32) {
    %c0_i32 = arith.constant 0 : i32
    %c0_i32_0 = arith.constant 0 : i32
    %c0_i32_1 = arith.constant 0 : i32
    return %c0_i32, %c0_i32_0 : i32, i32
  }
  func.func @transform_3(%arg0: i32, %arg1: i32) -> (i32, i32) {
    %c0_i32 = arith.constant 0 : i32
    %c0_i32_0 = arith.constant 0 : i32
    %c0_i32_1 = arith.constant 0 : i32
    return %c0_i32, %c0_i32_0 : i32, i32
  }
  func.func @transform_4(%arg0: i32, %arg1: i32) -> (i32, i32) {
    %c0_i32 = arith.constant 0 : i32
    %c0_i32_0 = arith.constant 0 : i32
    %c0_i32_1 = arith.constant 0 : i32
    return %c0_i32, %c0_i32_0 : i32, i32
  }
  func.func @transform_5(%arg0: i32, %arg1: i32) -> (i32, i32, i32) {
    %c0_i32 = arith.constant 0 : i32
    %c0_i32_0 = arith.constant 0 : i32
    return %arg0, %arg1, %c0_i32 : i32, i32, i32
  }
}

</mosaic_0001>

<llo_original>
// kernel: tpu_custom_call.1
$region0: #{tpu_custom_call.1}
  #allocation0 [shape = 'u32[]', space=smem, size = 0x4, offset = 0x4, fixed_abs, tag = 'smem constant byte address 0x4 - core index']
  #allocation1 [shape = 'u32[72,128]{1,0:T(1,128)}', space=vmem, size = 0x9000, scoped, tag = 'internal scratch']
  #allocation2 [shape = 'bf16[2,16]{1,0:T(2,128)(2,1)}', space=vmem, size = 0x200, scoped, tag = 'scratch operand']
  %s0 = inlined_call_operand.vmem [shape: f32[2,64,16], index: 0, kind: input, shape index: {}]
  %s1 = inlined_call_operand.vmem [shape: bf16[32,64], index: 1, kind: input, shape index: {}]
  %s2 = inlined_call_operand.vmem [shape: f32[1,64], index: 2, kind: input, shape index: {}]
  %s3 = inlined_call_operand.vmem [shape: bf16[32,48], index: 3, kind: input, shape index: {}]
  %s4 = inlined_call_operand.vmem [shape: f32[1,48], index: 4, kind: input, shape index: {}]
  %s5 = inlined_call_operand.vmem [shape: f32[2,64,48], index: 5, kind: output, shape index: {}]
  %s6 = sld [smem:[#allocation0]]
  $region57: #{tpu_custom_call.1} parent=0
    _
  %s8 = ssub.s32 1, %s6
  %s9 = scalar_select 0, %s8, %s6
  loop: start=0, step=1, limit=6
  $region2: #{tpu_custom_call.1} parent=0 // loop_pre_header
    _
  $region3: #{tpu_custom_call.1} parent=0 // loop_header
    %s11 = sphi 0, %s15
    %p12 = scmp.ge.s32.totalorder %s11, 6
    %s18 = sphi 0, %s30
    %s19 = sphi 0, %s26
    %s20 = sphi 0, %s18
    %s21 = sphi 0, %s19
    %s22 = sphi 0, %s20
    %s23 = sphi 0, %s21
    %s35 = sphi 0, %s37
    %s38 = sphi 0, %s35
    %s39 = sphi 0, %s38
    %s55 = sphi 0, %s39
    %s59 = sphi 0, %s59
    %s61 = sphi 0, %s59
    %s62 = sphi 0, %s61
    %s76 = sphi 0, %s62
    %s80 = sphi 0, %s80
    %s82 = sphi 0, %s80
    %s83 = sphi 0, %s82
    %s97 = sphi 0, %s83
    %s101 = sphi 0, %s101
    %s103 = sphi 0, %s101
    %s104 = sphi 0, %s103
    %s118 = sphi 0, %s104
    %s122 = sphi 0, %s122
    %s124 = sphi 0, %s122
    %s125 = sphi 0, %s124
    %s139 = sphi 0, %s125
    %s147 = sphi 0, %s149
    %s150 = sphi 0, %s147
    %s151 = sphi 0, %s150
    %s167 = sphi 0, %s151
  $region4: #{tpu_custom_call.1} parent=0 // loop_header_branch
    %14 = sbr.rel (%p12) target = $region8
  $region5: #{tpu_custom_call.1} parent=0 // loop_body
    %s16 = ssub.s32 %s11, 1
    %s17 = ssub.s32 %s11, 2
    %s24 = sadd.s32 1, %s19
    %p25 = scmp.ge.s32.totalorder %s24, 2
    %s26 = scalar_select %p25, 0, %s24
    %s27 = sadd.s32 1, %s18
    %s28 = scalar_select %p25, %s27, %s18
    %p29 = scmp.ge.s32.totalorder %s28, 2
    %s30 = scalar_select %p29, 0, %s28
    %s31 = ssub.s32 %s18, %s30
    %s32 = ssub.s32 %s19, %s26
    %s33 = sor.u32 %s31, %s32
    %p34 = scmp.eq.s32.totalorder %s33, 0
    %s36 = sadd.s32 %s35, 1
    %s37 = scalar_select %p34, %s35, %s36
    %p40 = pneg %p34
    %p41 = scmp.eq.s32.totalorder %s11, 3
    %p42 = por %p40, %p41
    %p43 = scmp.ne.s32.totalorder %s35, %s38
    %p44 = scmp.eq.s32.totalorder %s11, 0
    %p45 = por %p43, %p44
    %p46 = scmp.ne.s32.totalorder %s35, %s38
    %p47 = scmp.eq.s32.totalorder %s16, 3
    %p48 = por %p46, %p47
    %p49 = scmp.ne.s32.totalorder %s38, %s39
    %p50 = scmp.eq.s32.totalorder %s16, 0
    %p51 = por %p49, %p50
    %p52 = scmp.ne.s32.totalorder %s38, %s39
    %p53 = scmp.eq.s32.totalorder %s17, 3
    %p54 = por %p52, %p53
    %p56 = scmp.ne.s32.totalorder %s39, %s55
    %p57 = scmp.eq.s32.totalorder %s17, 0
    %p58 = por %p56, %p57
    %s60 = sadd.s32 %s59, 1
    %p63 = scmp.eq.s32.totalorder %s11, 3
    %p64 = scmp.ne.s32.totalorder %s59, %s61
    %p65 = scmp.eq.s32.totalorder %s11, 0
    %p66 = por %p64, %p65
    %p67 = scmp.ne.s32.totalorder %s59, %s61
    %p68 = scmp.eq.s32.totalorder %s16, 3
    %p69 = por %p67, %p68
    %p70 = scmp.ne.s32.totalorder %s61, %s62
    %p71 = scmp.eq.s32.totalorder %s16, 0
    %p72 = por %p70, %p71
    %p73 = scmp.ne.s32.totalorder %s61, %s62
    %p74 = scmp.eq.s32.totalorder %s17, 3
    %p75 = por %p73, %p74
    %p77 = scmp.ne.s32.totalorder %s62, %s76
    %p78 = scmp.eq.s32.totalorder %s17, 0
    %p79 = por %p77, %p78
    %s81 = sadd.s32 %s80, 1
    %p84 = scmp.eq.s32.totalorder %s11, 3
    %p85 = scmp.ne.s32.totalorder %s80, %s82
    %p86 = scmp.eq.s32.totalorder %s11, 0
    %p87 = por %p85, %p86
    %p88 = scmp.ne.s32.totalorder %s80, %s82
    %p89 = scmp.eq.s32.totalorder %s16, 3
    %p90 = por %p88, %p89
    %p91 = scmp.ne.s32.totalorder %s82, %s83
    %p92 = scmp.eq.s32.totalorder %s16, 0
    %p93 = por %p91, %p92
    %p94 = scmp.ne.s32.totalorder %s82, %s83
    %p95 = scmp.eq.s32.totalorder %s17, 3
    %p96 = por %p94, %p95
    %p98 = scmp.ne.s32.totalorder %s83, %s97
    %p99 = scmp.eq.s32.totalorder %s17, 0
    %p100 = por %p98, %p99
    %s102 = sadd.s32 %s101, 1
    %p105 = scmp.eq.s32.totalorder %s11, 3
    %p106 = scmp.ne.s32.totalorder %s101, %s103
    %p107 = scmp.eq.s32.totalorder %s11, 0
    %p108 = por %p106, %p107
    %p109 = scmp.ne.s32.totalorder %s101, %s103
    %p110 = scmp.eq.s32.totalorder %s16, 3
    %p111 = por %p109, %p110
    %p112 = scmp.ne.s32.totalorder %s103, %s104
    %p113 = scmp.eq.s32.totalorder %s16, 0
    %p114 = por %p112, %p113
    %p115 = scmp.ne.s32.totalorder %s103, %s104
    %p116 = scmp.eq.s32.totalorder %s17, 3
    %p117 = por %p115, %p116
    %p119 = scmp.ne.s32.totalorder %s104, %s118
    %p120 = scmp.eq.s32.totalorder %s17, 0
    %p121 = por %p119, %p120
    %s123 = sadd.s32 %s122, 1
    %p126 = scmp.eq.s32.totalorder %s11, 3
    %p127 = scmp.ne.s32.totalorder %s122, %s124
    %p128 = scmp.eq.s32.totalorder %s11, 0
    %p129 = por %p127, %p128
    %p130 = scmp.ne.s32.totalorder %s122, %s124
    %p131 = scmp.eq.s32.totalorder %s16, 3
    %p132 = por %p130, %p131
    %p133 = scmp.ne.s32.totalorder %s124, %s125
    %p134 = scmp.eq.s32.totalorder %s16, 0
    %p135 = por %p133, %p134
    %p136 = scmp.ne.s32.totalorder %s124, %s125
    %p137 = scmp.eq.s32.totalorder %s17, 3
    %p138 = por %p136, %p137
    %p140 = scmp.ne.s32.totalorder %s125, %s139
    %p141 = scmp.eq.s32.totalorder %s17, 0
    %p142 = por %p140, %p141
    %s143 = ssub.s32 %s18, %s30
    %s144 = ssub.s32 %s19, %s26
    %s145 = sor.u32 %s143, %s144
    %p146 = scmp.eq.s32.totalorder %s145, 0
    %s148 = sadd.s32 %s147, 1
    %s149 = scalar_select %p146, %s147, %s148
    %p152 = pneg %p146
    %p153 = scmp.eq.s32.totalorder %s11, 3
    %p154 = por %p152, %p153
    %p155 = scmp.ne.s32.totalorder %s147, %s150
    %p156 = scmp.eq.s32.totalorder %s11, 0
    %p157 = por %p155, %p156
    %p158 = scmp.ne.s32.totalorder %s147, %s150
    %p159 = scmp.eq.s32.totalorder %s16, 3
    %p160 = por %p158, %p159
    %p161 = scmp.ne.s32.totalorder %s150, %s151
    %p162 = scmp.eq.s32.totalorder %s16, 0
    %p163 = por %p161, %p162
    %p164 = scmp.ne.s32.totalorder %s150, %s151
    %p165 = scmp.eq.s32.totalorder %s17, 3
    %p166 = por %p164, %p165
    %p168 = scmp.ne.s32.totalorder %s151, %s167
    %p169 = scmp.eq.s32.totalorder %s17, 0
    %p170 = por %p168, %p169
    %p171 = scmp.le.s32.totalorder 1, %s11
    %p172 = scmp.lt.s32.totalorder %s11, 5
    %p173 = pnand %p171, %p172
    %p174 = pneg %p173
    // Predicated region
    $region9: #{tpu_custom_call.1} parent=5 // pred_check
      _
    $region10: #{tpu_custom_call.1} parent=5 // pred_check_branch
      %176 = sbr.rel (%p173) target = $region12
    $region11: #{tpu_custom_call.1} parent=5 // pred_region
      %s177 = ssub.s32 %s11, 1
      // Predicated region
      $region13: #{tpu_custom_call.1} parent=11 // pred_check
        %p178 = pneg %p72
      $region14: #{tpu_custom_call.1} parent=11 // pred_check_branch
        %180 = sbr.rel (%p178) target = $region16
      $region15: #{tpu_custom_call.1} parent=11 // pred_region
        _
      $region16: #{tpu_custom_call.1} parent=11 // pred_fallthru
        _
      // Predicated region
      $region17: #{tpu_custom_call.1} parent=11 // pred_check
        %p181 = pneg %p93
      $region18: #{tpu_custom_call.1} parent=11 // pred_check_branch
        %183 = sbr.rel (%p181) target = $region20
      $region19: #{tpu_custom_call.1} parent=11 // pred_region
        _
      $region20: #{tpu_custom_call.1} parent=11 // pred_fallthru
        _
      // Predicated region
      $region21: #{tpu_custom_call.1} parent=11 // pred_check
        %p184 = pneg %p114
      $region22: #{tpu_custom_call.1} parent=11 // pred_check_branch
        %186 = sbr.rel (%p184) target = $region24
      $region23: #{tpu_custom_call.1} parent=11 // pred_region
        _
      $region24: #{tpu_custom_call.1} parent=11 // pred_fallthru
        _
      // Predicated region
      $region25: #{tpu_custom_call.1} parent=11 // pred_check
        %p187 = pneg %p135
      $region26: #{tpu_custom_call.1} parent=11 // pred_check_branch
        %189 = sbr.rel (%p187) target = $region28
      $region27: #{tpu_custom_call.1} parent=11 // pred_region
        _
      $region28: #{tpu_custom_call.1} parent=11 // pred_fallthru
        _
    $region12: #{tpu_custom_call.1} parent=5 // pred_fallthru
      _
    %p190 = scmp.lt.s32.totalorder %s11, 4
    // Predicated region
    $region29: #{tpu_custom_call.1} parent=5 // pred_check
      %p191 = pneg %p190
    $region30: #{tpu_custom_call.1} parent=5 // pred_check_branch
      %193 = sbr.rel (%p191) target = $region32
    $region31: #{tpu_custom_call.1} parent=5 // pred_region
      // Predicated region
      $region33: #{tpu_custom_call.1} parent=31 // pred_check
        %p194 = pneg %p45
      $region34: #{tpu_custom_call.1} parent=31 // pred_check_branch
        %196 = sbr.rel (%p194) target = $region36
      $region35: #{tpu_custom_call.1} parent=31 // pred_region
        %s197 = smul.u32 4, %s19
        %p198 = scmp.lt.s32.totalorder %s18, 1
        %s199 = scalar_select %p198, %s18, 1
        %p200 = scmp.lt.s32.totalorder %s197, 7
        %s201 = scalar_select %p200, %s197, 7
        %s202 = smul.addr %s199, 8
        %s203 = sadd.s32 %s201, %s202
        %s204 = smul.addr %s203, 8
        %s205 = scalar_lea.vmem %s0, %s204
        %s206 = smul.u32 4, %s19
      $region36: #{tpu_custom_call.1} parent=31 // pred_fallthru
        _
    $region32: #{tpu_custom_call.1} parent=5 // pred_fallthru
      _
    %p207 = scmp.le.s32.totalorder 1, %s11
    %p208 = scmp.lt.s32.totalorder %s11, 5
    %p209 = pnand %p207, %p208
    %p210 = pneg %p209
    // Predicated region
    $region37: #{tpu_custom_call.1} parent=5 // pred_check
      _
    $region38: #{tpu_custom_call.1} parent=5 // pred_check_branch
      %212 = sbr.rel (%p209) target = $region40
    $region39: #{tpu_custom_call.1} parent=5 // pred_region
      %s213 = ssub.s32 %s11, 1
      %s214 = smul.u32 4, %s21
      %p215 = scmp.lt.s32.totalorder %s20, 1
      %s216 = scalar_select %p215, %s20, 1
      %p217 = scmp.lt.s32.totalorder %s214, 7
      %s218 = scalar_select %p217, %s214, 7
      %s219 = smul.addr %s216, 8
      %s220 = sadd.s32 %s218, %s219
      %s221 = smul.addr %s220, 8
      %s222 = scalar_lea.vmem %s0, %s221
      %p223 = pneg %p51
      %p224 = pneg %p48
      %p225 = pneg %p72
      %p226 = pneg %p69
      %p227 = pneg %p93
      %p228 = pneg %p90
      %p229 = pneg %p114
      %p230 = pneg %p111
      %p231 = pneg %p135
      %p232 = pneg %p132
      %p233 = pneg %p163
      %p234 = pneg %p160
      %s235 = smul.u32 4, %s21
      %p236 = scmp.lt.s32.totalorder %s20, 1
      %s237 = scalar_select %p236, %s20, 1
      %p238 = scmp.lt.s32.totalorder %s235, 7
      %s239 = scalar_select %p238, %s235, 7
      %s240 = smul.addr %s237, 8
      %s241 = sadd.s32 %s239, %s240
      %s242 = smul.addr %s241, 8
      %s243 = scalar_lea.vmem %s5, %s242
      %s244 = smul.u32 4, %s21
      %p245 = scmp.lt.s32.totalorder %s20, 1
      %s246 = scalar_select %p245, %s20, 1
      %p247 = scmp.lt.s32.totalorder %s244, 7
      %s248 = scalar_select %p247, %s244, 7
      %s249 = smul.addr %s246, 8
      %s250 = sadd.s32 %s248, %s249
      %s251 = smul.addr %s250, 8
      %s252 = scalar_lea.vmem %s0, %s251
      %s253 = smul.u32 4, %s21
      %s254 = smul.u32 4, %s21
      %p255 = scmp.lt.s32.totalorder %s20, 1
      %s256 = scalar_select %p255, %s20, 1
      %p257 = scmp.lt.s32.totalorder %s254, 7
      %s258 = scalar_select %p257, %s254, 7
      %s259 = smul.addr %s256, 8
      %s260 = sadd.s32 %s258, %s259
      %s261 = smul.addr %s260, 8
      %s262 = scalar_lea.vmem %s5, %s261
      %s263 = smul.u32 4, %s21
      %v265 = vld [vmem:[%s252] sm:$0xff]
      %v266 = vld [vmem:[%s252 + $0x8] sm:$0xff]
      %v267 = vld [vmem:[%s252 + $0x10] sm:$0xff]
      %v268 = vld [vmem:[%s252 + $0x18] sm:$0xff]
      %v269 = vpack.c.bf16 %v265, %v265
      %v270 = vpack.c.bf16 %v266, %v266
      %v271 = vpack.c.bf16 %v267, %v267
      %v272 = vpack.c.bf16 %v268, %v268
      %p273 = scmp.eq.s32.totalorder %s21, 0
      // Predicated region
      $region41: #{tpu_custom_call.1} parent=39 // pred_check
        %p274 = pneg %p273
      $region42: #{tpu_custom_call.1} parent=39 // pred_check_branch
        %276 = sbr.rel (%p274) target = $region44
      $region43: #{tpu_custom_call.1} parent=39 // pred_region
        %vm277 = vcmask 122880
        %278 = vst.msk [vmem:[#allocation2] sm:$0x1] %vm277, 0
      $region44: #{tpu_custom_call.1} parent=39 // pred_fallthru
        _
      %v279 = vld [vmem:[#allocation2] sm:$0x1]
      %v284 = vunpack.c.l.b16 %v269
      %v285 = vunpack.c.l.b16 %v270
      %v286 = vunpack.c.l.b16 %v271
      %v287 = vunpack.c.l.b16 %v272
      %v288 = vpack.c.b16 %v285, %v284
      %v289 = vpack.c.b16 %v287, %v286
      %vm290 = vcmask 1040384
      %v291 = vrot.slane %v288, 7
      %v292 = vrot.slane %v289, 7
      %v293 = vsel %vm290, %v291, %v292
      %vm294 = vcmask 1040384
      %v297 = vsel %vm294, %v279, %v291
      %299 = vst [vmem:[#allocation1] sm:$0xff] %v272
      %s300 = scalar_lea.vmem [#allocation1], 3
      %v301 = vld [vmem:[%s300] ss:$4 sm:$0xff]
      %vm303 = vcmask 122880
      %304 = vst.msk [vmem:[#allocation2] sm:$0x1] %vm303, %v301
      %vm306 = vcmask 1046528
      %v307 = vrot.slane %v297, 1
      %v308 = vrot.slane %v293, 1
      %v309 = vsel %vm306, %v307, %v308
      %v310 = vrot.slane %v292, 1
      %v311 = vsel %vm306, %v308, %v310
      %312 = vrot.lane.b32.xlu0 %v309, 16
      %v313 = vpop.permute.xlu0 %312
      %314 = vrot.lane.b32.xlu0 %v311, 16
      %v315 = vpop.permute.xlu0 %314
      %vm316 = vcmask 130048
      %v318 = vsel %vm316, %v297, %v313
      %v321 = vsel %vm316, %v293, %v315
      %v322 = vld [vmem:[%s1] sm:$0xf]
      %v323 = vld [vmem:[%s1 + $0x4] sm:$0xf]
      %v324 = vld [vmem:[%s1 + $0x8] sm:$0xf]
      %v325 = vld [vmem:[%s1 + $0xc] sm:$0xf]
      %v326 = vld [vmem:[%s2] sm:$0x1]
      %v328 = vperm.slane %v326, 0
      %v334 = vunpack.c.l.b16 %v322
      %v335 = vunpack.c.l.b16 %v323
      %v336 = vunpack.c.l.b16 %v324
      %v337 = vunpack.c.l.b16 %v325
      %v338 = vpack.c.b16 %v335, %v334
      %v339 = vpack.c.b16 %v337, %v336
      %vm342 = vcmask 261120
      %v343 = vsel %vm342, %v318, 0
      %v345 = vsel %vm342, %v321, 0
      %347 = vmatpush.bf16.msra.mxu0 0
      %348 = vmatpush.bf16.msra.mxu0 0
      %349 = vmatpush.bf16.msra.mxu0 0
      %350 = vmatpush.bf16.msra.mxu0 0
      %351 = vmatpush.bf16.msra.mxu0 0
      %352 = vmatpush.bf16.msra.mxu0 0
      %353 = vmatpush.bf16.msra.mxu0 %v339
      %354 = vmatpush.bf16.msra.mxu0 %v338
      %355 = vmatmul.bf16.gmra.mxu0 %v343
      %v356 = vpop.f32.mrf.mxu0
      %v357 = vadd.f32 %v328, %v356
      %v358 = vpop.f32.mrf.mxu0
      %v359 = vadd.f32 %v328, %v358
      %360 = vmatmul.bf16.gmra.mxu0 %v345
      %v361 = vpop.f32.mrf.mxu0
      %v362 = vadd.f32 %v328, %v361
      %v363 = vpop.f32.mrf.mxu0
      %v364 = vadd.f32 %v328, %v363
      %365 = vdwg.mxu0
      %v366 = vtanh.pop %v357
      %v367 = vtanh.pop %v359
      %v368 = vtanh.pop %v362
      %v369 = vtanh.pop %v364
      %v370 = vxor.u32 %v357, 2147483648
      %v371 = vxor.u32 %v359, 2147483648
      %v372 = vxor.u32 %v362, 2147483648
      %v373 = vxor.u32 %v364, 2147483648
      %v374 = vmul.f32 %v370, 1.442695
      %v375 = vpow.pop %v374
      %v376 = vmul.f32 %v371, 1.442695
      %v377 = vpow.pop %v376
      %v378 = vmul.f32 %v372, 1.442695
      %v379 = vpow.pop %v378
      %v380 = vmul.f32 %v373, 1.442695
      %v381 = vpow.pop %v380
      %v382 = vadd.f32 %v375, 1.0
      %v383 = vadd.f32 %v377, 1.0
      %v384 = vadd.f32 %v379, 1.0
      %v385 = vadd.f32 %v381, 1.0
      %v386 = vrcp.pop %v382
      %v387 = vmul.f32 %v382, %v386
      %v388 = vsub.f32 1.0, %v387
      %v389 = vmul.f32 %v386, %v388
      %v390 = vadd.f32 %v386, %v389
      %vm391 = vweird.f32 %v382
      %vm392 = vweird.f32 %v386
      %vm393 = vmor %vm391, %vm392
      %v394 = vsel %vm393, %v386, %v390
      %v395 = vand.u32 2147483647, %v382
      %vm396 = vcmp.eq.f32.partialorder %v395, 8.507059e+37
      %v397 = vand.u32 %v382, 2147483648
      %v398 = vor.u32 1.1754944e-38, %v397
      %v399 = vsel %vm396, %v398, %v394
      %v400 = vmul.f32 1.0, %v399
      %v401 = vrcp.pop %v383
      %v402 = vmul.f32 %v383, %v401
      %v403 = vsub.f32 1.0, %v402
      %v404 = vmul.f32 %v401, %v403
      %v405 = vadd.f32 %v401, %v404
      %vm406 = vweird.f32 %v383
      %vm407 = vweird.f32 %v401
      %vm408 = vmor %vm406, %vm407
      %v409 = vsel %vm408, %v401, %v405
      %v410 = vand.u32 2147483647, %v383
      %vm411 = vcmp.eq.f32.partialorder %v410, 8.507059e+37
      %v412 = vand.u32 %v383, 2147483648
      %v413 = vor.u32 1.1754944e-38, %v412
      %v414 = vsel %vm411, %v413, %v409
      %v415 = vmul.f32 1.0, %v414
      %v416 = vrcp.pop %v384
      %v417 = vmul.f32 %v384, %v416
      %v418 = vsub.f32 1.0, %v417
      %v419 = vmul.f32 %v416, %v418
      %v420 = vadd.f32 %v416, %v419
      %vm421 = vweird.f32 %v384
      %vm422 = vweird.f32 %v416
      %vm423 = vmor %vm421, %vm422
      %v424 = vsel %vm423, %v416, %v420
      %v425 = vand.u32 2147483647, %v384
      %vm426 = vcmp.eq.f32.partialorder %v425, 8.507059e+37
      %v427 = vand.u32 %v384, 2147483648
      %v428 = vor.u32 1.1754944e-38, %v427
      %v429 = vsel %vm426, %v428, %v424
      %v430 = vmul.f32 1.0, %v429
      %v431 = vrcp.pop %v385
      %v432 = vmul.f32 %v385, %v431
      %v433 = vsub.f32 1.0, %v432
      %v434 = vmul.f32 %v431, %v433
      %v435 = vadd.f32 %v431, %v434
      %vm436 = vweird.f32 %v385
      %vm437 = vweird.f32 %v431
      %vm438 = vmor %vm436, %vm437
      %v439 = vsel %vm438, %v431, %v435
      %v440 = vand.u32 2147483647, %v385
      %vm441 = vcmp.eq.f32.partialorder %v440, 8.507059e+37
      %v442 = vand.u32 %v385, 2147483648
      %v443 = vor.u32 1.1754944e-38, %v442
      %v444 = vsel %vm441, %v443, %v439
      %v445 = vmul.f32 1.0, %v444
      %450 = vrot.lane.b32.xlu0 %v400, 96
      %v451 = vpop.permute.xlu0 %450
      %452 = vrot.lane.b32.xlu0 %v415, 96
      %v453 = vpop.permute.xlu0 %452
      %454 = vrot.lane.b32.xlu0 %v430, 96
      %v455 = vpop.permute.xlu0 %454
      %456 = vrot.lane.b32.xlu0 %v445, 96
      %v457 = vpop.permute.xlu0 %456
      %v462 = vmul.f32 %v366, %v451
      %v463 = vmul.f32 %v367, %v453
      %v464 = vmul.f32 %v368, %v455
      %v465 = vmul.f32 %v369, %v457
      %v466 = vpack.c.bf16 %v463, %v462
      %v467 = vpack.c.bf16 %v465, %v464
      %v468 = vld [vmem:[%s3] sm:$0xf]
      %v469 = vld [vmem:[%s3 + $0x4] sm:$0xf]
      %v470 = vld [vmem:[%s3 + $0x8] sm:$0xf]
      %v471 = vld [vmem:[%s3 + $0xc] sm:$0xf]
      %v472 = vld [vmem:[%s4] sm:$0x1]
      %v474 = vperm.slane %v472, 0
      %v480 = vunpack.c.l.b16 %v468
      %v481 = vunpack.c.l.b16 %v469
      %v482 = vunpack.c.l.b16 %v470
      %v483 = vunpack.c.l.b16 %v471
      %v484 = vpack.c.b16 %v481, %v480
      %v485 = vpack.c.b16 %v483, %v482
      %v489 = vsel %vm342, %v466, 0
      %v492 = vsel %vm342, %v467, 0
      %494 = vmatpush.bf16.msra.mxu0 0
      %495 = vmatpush.bf16.msra.mxu0 0
      %496 = vmatpush.bf16.msra.mxu0 0
      %497 = vmatpush.bf16.msra.mxu0 0
      %498 = vmatpush.bf16.msra.mxu0 0
      %499 = vmatpush.bf16.msra.mxu0 0
      %500 = vmatpush.bf16.msra.mxu0 %v485
      %501 = vmatpush.bf16.msra.mxu0 %v484
      %502 = vmatmul.bf16.gmra.mxu0 %v489
      %v503 = vpop.f32.mrf.mxu0
      %v504 = vadd.f32 %v474, %v503
      %v505 = vpop.f32.mrf.mxu0
      %v506 = vadd.f32 %v474, %v505
      %507 = vmatmul.bf16.gmra.mxu0 %v492
      %v508 = vpop.f32.mrf.mxu0
      %v509 = vadd.f32 %v474, %v508
      %v510 = vpop.f32.mrf.mxu0
      %v511 = vadd.f32 %v474, %v510
      %512 = vdwg.mxu0
      %v513 = vsel %vm316, %v265, 0.0
      %v514 = vsel %vm316, %v266, 0.0
      %v515 = vsel %vm316, %v267, 0.0
      %v516 = vsel %vm316, %v268, 0.0
      %v517 = vadd.f32 %v504, %v513
      %v518 = vadd.f32 %v506, %v514
      %v519 = vadd.f32 %v509, %v515
      %v520 = vadd.f32 %v511, %v516
      %vm521 = vcmask 392192
      %522 = vst.msk [vmem:[%s262] sm:$0xff] %vm521, %v517
      %523 = vst.msk [vmem:[%s262 + $0x8] sm:$0xff] %vm521, %v518
      %524 = vst.msk [vmem:[%s262 + $0x10] sm:$0xff] %vm521, %v519
      %525 = vst.msk [vmem:[%s262 + $0x18] sm:$0xff] %vm521, %v520
      %s526 = smul.u32 4, %s21
      %p527 = scmp.lt.s32.totalorder %s20, 1
      %s528 = scalar_select %p527, %s20, 1
      %p529 = scmp.lt.s32.totalorder %s526, 7
      %s530 = scalar_select %p529, %s526, 7
      %s531 = smul.addr %s528, 8
      %s532 = sadd.s32 %s530, %s531
      %s533 = smul.addr %s532, 8
      %s534 = scalar_lea.vmem %s5, %s533
      // Predicated region
      $region45: #{tpu_custom_call.1} parent=39 // pred_check
        %p535 = pneg %p160
      $region46: #{tpu_custom_call.1} parent=39 // pred_check_branch
        %537 = sbr.rel (%p535) target = $region48
      $region47: #{tpu_custom_call.1} parent=39 // pred_region
        %s538 = smul.u32 4, %s21
      $region48: #{tpu_custom_call.1} parent=39 // pred_fallthru
        _
    $region40: #{tpu_custom_call.1} parent=5 // pred_fallthru
      _
    %p539 = scmp.le.s32.totalorder 2, %s11
    // Predicated region
    $region49: #{tpu_custom_call.1} parent=5 // pred_check
      %p540 = pneg %p539
    $region50: #{tpu_custom_call.1} parent=5 // pred_check_branch
      %542 = sbr.rel (%p540) target = $region52
    $region51: #{tpu_custom_call.1} parent=5 // pred_region
      %s543 = ssub.s32 %s11, 2
      // Predicated region
      $region53: #{tpu_custom_call.1} parent=51 // pred_check
        %p544 = pneg %p166
      $region54: #{tpu_custom_call.1} parent=51 // pred_check_branch
        %546 = sbr.rel (%p544) target = $region56
      $region55: #{tpu_custom_call.1} parent=51 // pred_region
        %s547 = smul.u32 4, %s23
        %p548 = scmp.lt.s32.totalorder %s22, 1
        %s549 = scalar_select %p548, %s22, 1
        %p550 = scmp.lt.s32.totalorder %s547, 7
        %s551 = scalar_select %p550, %s547, 7
        %s552 = smul.addr %s549, 8
        %s553 = sadd.s32 %s551, %s552
        %s554 = smul.addr %s553, 8
        %s555 = scalar_lea.vmem %s5, %s554
      $region56: #{tpu_custom_call.1} parent=51 // pred_fallthru
        _
    $region52: #{tpu_custom_call.1} parent=5 // pred_fallthru
      _
  $region6: #{tpu_custom_call.1} parent=0 // loop_footer
    %s15 = sadd.s32 1, %s11
  $region7: #{tpu_custom_call.1} parent=0 // loop_footer_branch
    %10 = sbr.rel target = $region3
  $region8: #{tpu_custom_call.1} parent=0 // loop_exit
    _

</llo_original>
